<compile_context>
chip_gen: v7x
topology: tpu7x:2x2x1
jax: 0.10.0
libtpu: 0.0.40
codegen_flags: <defaults>
</compile_context>

<pallas_src>
import numpy as np
import jax
import jax.numpy as jnp
from jax import lax
from jax.experimental import pallas as pl
from jax.experimental.pallas import tpu as pltpu


_EPS = 1e-12  # matches torch.nn.functional.normalize default eps


def _round_up(n, m):
    return ((n + m - 1) // m) * m


def _vmem_capacity_bytes():
    """Physical VMEM per TensorCore (v5e/v6e: 128 MiB, v7x: 64 MiB); conservative fallback."""
    try:
        return int(pltpu.get_tpu_info().vmem_capacity_bytes)
    except Exception:
        return 64 * 1024 * 1024


def _row_scale(x_tile, exp_scale):
    """exp(logit_scale) / max(||row||_2, eps) as a [TB, 1] f32 column.
    Sum-of-squares accumulates in f32 (XLU reduce); rsqrt goes to the EUP.
    Zero (padding) rows hit the eps branch and stay zero after 0 * 1/eps."""
    xf = x_tile.astype(jnp.float32)
    sq = jnp.sum(xf * xf, axis=1, keepdims=True)
    inv_norm = lax.rsqrt(jnp.maximum(sq, _EPS * _EPS))
    return inv_norm * exp_scale  # SMEM scalar splat-multiply, no broadcast tensor


def _kernel_cached(scale_ref, x_ref, w_ref, o_ref, xs_ref):
    """Grid = (B tiles, C tiles) with the C axis innermost and sequential ("arbitrary").
    The normalized/scaled x row-tile is computed once per i (at j == 0) into VMEM
    scratch and reused for every weight column tile."""
    @pl.when(pl.program_id(1) == 0)
    def _():
        rs = _row_scale(x_ref[...], scale_ref[0])
        xs_ref[...] = (x_ref[...].astype(jnp.float32) * rs).astype(xs_ref.dtype)

    o_ref[...] = jnp.dot(
        xs_ref[...], w_ref[...], preferred_element_type=jnp.float32
    ).astype(o_ref.dtype)


def _kernel_inline(scale_ref, x_ref, w_ref, o_ref):
    """Single-B-tile variant: no scratch, both grid axes "parallel" so a megacore chip
    (v7x) can split the weight stream across its two TensorCores."""
    rs = _row_scale(x_ref[...], scale_ref[0])
    xs = (x_ref[...].astype(jnp.float32) * rs).astype(w_ref.dtype)
    o_ref[...] = jnp.dot(
        xs, w_ref[...], preferred_element_type=jnp.float32
    ).astype(o_ref.dtype)


def make_logit_head(w_dc, logit_scale, *, tb=None, tc=None, out_dtype=jnp.float32):
    """Build f(x) -> [B, C] logits = normalize(x, dim=1) @ w_dc * exp(logit_scale).

    w_dc: [D, C] head weight (nn.Linear(D, C, bias=False).weight transposed).
    The weight is zero-padded to a lane-dense multiple of the C tile exactly ONCE here,
    not on every call."""
    D, C = w_dc.shape
    out_dtype = jnp.dtype(out_dtype)
    w_item = jnp.dtype(w_dc.dtype).itemsize

    cap = _vmem_capacity_bytes()
    big_vmem = cap >= 100 * 1024 * 1024          # v5e / v6e (128 MiB VMEM)
    budget = int(cap * 0.6)                      # headroom for compiler-internal scratch

    # ---- C tile: lane dense (multiple of 128); large on big-VMEM chips. ----
    Cp128 = _round_up(C, 128)
    if tc is None:
        tc_target = 2048 if big_vmem else 1024
        tc = Cp128 if Cp128 <= tc_target else tc_target
    assert tc % 128 == 0
    Cp = _round_up(C, tc)
    w_padded = jnp.pad(w_dc, ((0, 0), (0, Cp - C))) if Cp != C else w_dc

    # ---- B tile target: big enough to push weight-stream arithmetic intensity
    #      (~TB flop/byte for bf16 weights) toward the HBM ridge. ----
    tb_target = 1024 if big_vmem else 512

    # exp(logit_scale) is a single scalar: compute it once here, pass via SMEM.
    exp_scale = jnp.exp(jnp.asarray(logit_scale, dtype=jnp.float32)).reshape(1)

    def forward(x):
        B, Dx = x.shape
        assert Dx == D, f"feature dim mismatch: x has {Dx}, head weight has {D}"
        x_item = jnp.dtype(x.dtype).itemsize

        Bp8 = _round_up(B, 8)
        TB = tb if tb is not None else (Bp8 if Bp8 <= tb_target else tb_target)
        assert TB % 8 == 0
        TC = tc

        def tile_bytes(tb_, tc_):
            return (2 * tb_ * D * x_item                      # x tile (double-buffered)
                    + 2 * D * tc_ * w_item                    # weight tiles (double-buffered)
                    + 2 * tb_ * tc_ * out_dtype.itemsize      # output tiles (double-buffered)
                    + tb_ * D * w_item)                       # xs scratch

        # Shrink (TC first, then TB) until the working set fits the VMEM budget.
        while tile_bytes(TB, TC) > budget and TC > 128:
            TC = max(128, _round_up(TC // 2, 128))
        while tile_bytes(TB, TC) > budget and TB > 8:
            TB = max(8, _round_up(TB // 2, 8))

        Bp = _round_up(B, TB)
        Cp_run = _round_up(Cp, TC)   # only differs from Cp if TC had to shrink to a non-divisor
        wp = w_padded if Cp_run == Cp else jnp.pad(w_padded, ((0, 0), (0, Cp_run - Cp)))
        xp = jnp.pad(x, ((0, Bp - B), (0, 0))) if Bp != B else x

        nb, nc = Bp // TB, Cp_run // TC
        grid = (nb, nc)

        vmem_limit = int(min(cap, max(2 * tile_bytes(TB, TC), 32 * 1024 * 1024)))

        common = dict(
            out_shape=jax.ShapeDtypeStruct((Bp, Cp_run), out_dtype),
            grid=grid,
            in_specs=[
                pl.BlockSpec(memory_space=pltpu.MemorySpace.SMEM),   # exp(logit_scale) scalar
                pl.BlockSpec((TB, D), lambda i, j: (i, 0)),          # x row tile (reused over j)
                pl.BlockSpec((D, TC), lambda i, j: (0, j)),          # weight column tile
            ],
            out_specs=pl.BlockSpec((TB, TC), lambda i, j: (i, j)),
        )

        if nb >= 2:
            # Cache the scaled rows once per i tile; j MUST be sequential ("arbitrary").
            out = pl.pallas_call(
                _kernel_cached,
                scratch_shapes=[pltpu.VMEM((TB, D), wp.dtype)],
                compiler_params=pltpu.CompilerParams(
                    dimension_semantics=("parallel", "arbitrary"),
                    vmem_limit_bytes=vmem_limit,
                ),
                **common,
            )(exp_scale, xp, wp)
        else:
            # Single B tile: both axes parallel so two TensorCores split the weight stream.
            out = pl.pallas_call(
                _kernel_inline,
                compiler_params=pltpu.CompilerParams(
                    dimension_semantics=("parallel", "parallel"),
                    vmem_limit_bytes=vmem_limit,
                ),
                **common,
            )(exp_scale, xp, wp)

        return out[:B, :C]

    return forward


def logit_head(x, w_dc, logit_scale, *, tb=None, tc=None, out_dtype=jnp.float32):
    """One-shot convenience wrapper (pads the weight on every call; prefer make_logit_head)."""
    return make_logit_head(w_dc, logit_scale, tb=tb, tc=tc, out_dtype=out_dtype)(x)


def _reference(x, w_dc, logit_scale):
    xf = x.astype(jnp.float32)
    norm = jnp.linalg.norm(xf, axis=1, keepdims=True)
    xn = xf / jnp.maximum(norm, 1e-12)
    return (xn @ w_dc.astype(jnp.float32)) * jnp.exp(jnp.float32(logit_scale))


if __name__ == "__main__":
    key = jax.random.PRNGKey(0)
    k_x, k_w = jax.random.split(key)

    # Small shapes consistent with a CLIP-style classifier head; chosen so the forced-tile
    # run exercises a real (B-tile, C-tile) grid plus C padding (200 -> 256 lanes).
    B, D, C = 16, 64, 200
    x = jax.random.normal(k_x, (B, D), dtype=jnp.float32)
    # nn.Linear(D, C, bias=False) weight, stored transposed as [D, C].
    w_dc = jax.random.normal(k_w, (D, C), dtype=jnp.float32) / np.sqrt(D)
    logit_scale = float(np.log(1.0 / 0.07))

    ref = _reference(x, w_dc, logit_scale)

    # 1) Default auto-tiled path (single B tile -> inline kernel, both axes "parallel").
    head = make_logit_head(w_dc, logit_scale)
    out = jax.block_until_ready(head(x))
    np.testing.assert_allclose(np.asarray(out), np.asarray(ref), rtol=1e-5, atol=1e-5)

    # 2) Forced 2x2 grid to exercise the scratch-cached kernel path (j == 0 init + reuse).
    head_tiled = make_logit_head(w_dc, logit_scale, tb=8, tc=128)
    out_tiled = jax.block_until_ready(head_tiled(x))
    np.testing.assert_allclose(np.asarray(out_tiled), np.asarray(ref), rtol=1e-5, atol=1e-5)

    # 3) bf16 weight streaming (the production bandwidth win), looser tolerance.
    head_bf16 = make_logit_head(w_dc.astype(jnp.bfloat16), logit_scale, tb=8, tc=128)
    out_bf16 = jax.block_until_ready(head_bf16(x))
    np.testing.assert_allclose(np.asarray(out_bf16), np.asarray(ref), rtol=5e-2, atol=5e-2)

    print("KERNEL_OK")
</pallas_src>

<mosaic_0001>
module attributes {stable_mosaic.version = 11 : i64} {
  func.func @_kernel_inline(%arg0: i32, %arg1: i32, %arg2: memref<1xf32, #tpu.memory_space<smem>>, %arg3: memref<16x64xf32, #tpu.memory_space<vmem>>, %arg4: memref<64x256xf32, #tpu.memory_space<vmem>>, %arg5: memref<16x256xf32, #tpu.memory_space<vmem>>) attributes {dimension_semantics = [#tpu.dimension_semantics<parallel>, #tpu.dimension_semantics<parallel>], iteration_bounds = array<i64: 1, 1>, scalar_prefetch = 0 : i64, scratch_operands = 0 : i64, tpu.core_type = #tpu.core_type<tc>, window_params = [{transform_indices = @transform_0, window_bounds = array<i64: 1>}, {transform_indices = @transform_1, window_bounds = array<i64: 16, 64>}, {transform_indices = @transform_2, window_bounds = array<i64: 64, 256>}, {transform_indices = @transform_3, window_bounds = array<i64: 16, 256>}]} {
    %c0 = arith.constant 0 : index
    %c0_0 = arith.constant 0 : index
    %0 = vector.load %arg3[%c0, %c0_0] : memref<16x64xf32, #tpu.memory_space<vmem>>, vector<16x64xf32>
    %c0_1 = arith.constant 0 : index
    %1 = memref.load %arg2[%c0_1] : memref<1xf32, #tpu.memory_space<smem>>
    %2 = arith.mulf %0, %0 : vector<16x64xf32>
    %cst = arith.constant dense<0.000000e+00> : vector<16xf32>
    %3 = vector.multi_reduction <add>, %2, %cst [1] : vector<16x64xf32> to vector<16xf32>
    %4 = vector.shape_cast %3 : vector<16xf32> to vector<16x1xf32>
    %cst_2 = arith.constant 1.000000e-24 : f32
    %5 = vector.broadcast %cst_2 : f32 to vector<16x1xf32>
    %6 = arith.maximumf %4, %5 : vector<16x1xf32>
    %7 = math.rsqrt %6 : vector<16x1xf32>
    %8 = vector.broadcast %1 : f32 to vector<16x1xf32>
    %9 = arith.mulf %7, %8 : vector<16x1xf32>
    %c0_3 = arith.constant 0 : index
    %c0_4 = arith.constant 0 : index
    %10 = vector.load %arg3[%c0_3, %c0_4] : memref<16x64xf32, #tpu.memory_space<vmem>>, vector<16x64xf32>
    %11 = vector.broadcast %9 : vector<16x1xf32> to vector<16x64xf32>
    %12 = arith.mulf %10, %11 : vector<16x64xf32>
    %c0_5 = arith.constant 0 : index
    %c0_6 = arith.constant 0 : index
    %13 = vector.load %arg4[%c0_5, %c0_6] : memref<64x256xf32, #tpu.memory_space<vmem>>, vector<64x256xf32>
    %cst_7 = arith.constant dense<0.000000e+00> : vector<16x256xf32>
    %14 = tpu.matmul %12, %13, %cst_7 {dimension_numbers = #tpu.dot_dimension_numbers<[1], [0], [0], [1], [0, 0, 1, 1], [], []>} : vector<16x64xf32>, vector<64x256xf32>, vector<16x256xf32> -> vector<16x256xf32>
    %c0_8 = arith.constant 0 : index
    %c0_9 = arith.constant 0 : index
    %15 = vector.load %arg5[%c0_8, %c0_9] : memref<16x256xf32, #tpu.memory_space<vmem>>, vector<16x256xf32>
    tpu.vector_store %arg5[%c0_8, %c0_9], %14 {strides = array<i32>} : memref<16x256xf32, #tpu.memory_space<vmem>>, vector<16x256xf32>,
    return
  }
  func.func @transform_0(%arg0: i32, %arg1: i32) -> i32 {
    %c0_i32 = arith.constant 0 : i32
    %c0_i32_0 = arith.constant 0 : i32
    return %c0_i32 : i32
  }
  func.func @transform_1(%arg0: i32, %arg1: i32) -> (i32, i32) {
    %c0_i32 = arith.constant 0 : i32
    %c0_i32_0 = arith.constant 0 : i32
    return %arg0, %c0_i32 : i32, i32
  }
  func.func @transform_2(%arg0: i32, %arg1: i32) -> (i32, i32) {
    %c0_i32 = arith.constant 0 : i32
    %c0_i32_0 = arith.constant 0 : i32
    return %c0_i32, %arg1 : i32, i32
  }
  func.func @transform_3(%arg0: i32, %arg1: i32) -> (i32, i32) {
    %c0_i32 = arith.constant 0 : i32
    return %arg0, %arg1 : i32, i32
  }
}

</mosaic_0001>

<llo_original>
// kernel: tpu_custom_call.1
$region0: #{tpu_custom_call.1}
  #allocation0 [shape = 'u32[]', space=smem, size = 0x4, offset = 0x4, fixed_abs, tag = 'smem constant byte address 0x4 - core index']
  #allocation1 [shape = 'u32[144,128]{1,0:T(1,128)}', space=vmem, size = 0x12000, scoped, tag = 'internal scratch']
  #allocation2 [shape = 'f32[1]{0:T(128)S(6)}', space=smem, size = 0x200, scoped, tag = 'scoped memory for tpu_custom_call.1']
  %s0 = inlined_call_operand.<no memory space> [shape: f32[1], index: 0, kind: input, shape index: {}]
  %s1 = inlined_call_operand.hbm [shape: f32[16,64], index: 1, kind: input, shape index: {}]
  %s2 = inlined_call_operand.hbm [shape: f32[64,256], index: 2, kind: input, shape index: {}]
  %s3 = inlined_call_operand.hbm [shape: f32[16,256], index: 3, kind: output, shape index: {}]
  %s4 = sld [smem:[#allocation0]]
  $region30: #{tpu_custom_call.1} parent=0
    _
  %s6 = ssub.s32 1, %s4
  %s7 = scalar_select 0, %s6, %s4
  %8 = sst [smem:[#allocation2]] %s0
  $region1: #{tpu_custom_call.1} parent=0
    #allocation3 [shape = 'u8[8192]{0}', space=vmem, size = 0x2000, scoped, tag = 'input window, operand 1, single buffered']
    #allocation4 [shape = 's32[1]{0}', space=sflag, size = 0x4, scoped, tag = 'scoped memory for tpu_custom_call.1']
    #allocation5 [shape = 's32[1]{0}', space=sflag, size = 0x4, scoped, tag = 'scoped memory for tpu_custom_call.1']
    #allocation6 [shape = 'u8[65536]{0}', space=vmem, size = 0x10000, scoped, tag = 'input window, operand 2, single buffered']
    #allocation7 [shape = 's32[1]{0}', space=sflag, size = 0x4, scoped, tag = 'scoped memory for tpu_custom_call.1']
    #allocation8 [shape = 'u8[16384]{0}', space=vmem, size = 0x4000, scoped, tag = 'output window, operand 0, single buffered']
    %9 = vsyncpa [#allocation4], 0
    %10 = vsyncpa [#allocation7], 0
    %11 = vsyncpa [#allocation5], 0
    // Predicated region
    $region2: #{tpu_custom_call.1} parent=1 // pred_check
      _
    $region3: #{tpu_custom_call.1} parent=1 // pred_check_branch
      %13 = sbr.rel (0) target = $region5
    $region4: #{tpu_custom_call.1} parent=1 // pred_region
      _
    $region5: #{tpu_custom_call.1} parent=1 // pred_fallthru
      _
    // Predicated region
    $region6: #{tpu_custom_call.1} parent=1 // pred_check
      _
    $region7: #{tpu_custom_call.1} parent=1 // pred_check_branch
      %15 = sbr.rel (0) target = $region9
    $region8: #{tpu_custom_call.1} parent=1 // pred_region
      %s17 = ssub.s32 256, 256
      %18 = vsyncadd [#allocation4], %s17
      %s19 = sshll.u32 [#allocation3], 4
      %s20 = int_to_ptr.vmem [resolvable:$true] %s19
      %25 = dma.hbm_to_vmem [thread:$0]  %s1, 256, %s20, [#allocation4], 128, 128, 8
    $region9: #{tpu_custom_call.1} parent=1 // pred_fallthru
      _
    // Predicated region
    $region10: #{tpu_custom_call.1} parent=1 // pred_check
      _
    $region11: #{tpu_custom_call.1} parent=1 // pred_check_branch
      %27 = sbr.rel (0) target = $region13
    $region12: #{tpu_custom_call.1} parent=1 // pred_region
      %s29 = ssub.s32 2048, 2048
      %30 = vsyncadd [#allocation7], %s29
      %s31 = sshll.u32 [#allocation6], 4
      %s32 = int_to_ptr.vmem [resolvable:$true] %s31
      %37 = dma.hbm_to_vmem [thread:$0]  %s2, 2048, %s32, [#allocation7], 256, 256, 16
    $region13: #{tpu_custom_call.1} parent=1 // pred_fallthru
      _
    // Predicated region
    $region14: #{tpu_custom_call.1} parent=1 // pred_check
      _
    $region15: #{tpu_custom_call.1} parent=1 // pred_check_branch
      %39 = sbr.rel (0) target = $region17
    $region16: #{tpu_custom_call.1} parent=1 // pred_region
      %40 = dma.done [#allocation4], 256
    $region17: #{tpu_custom_call.1} parent=1 // pred_fallthru
      _
    // Predicated region
    $region18: #{tpu_custom_call.1} parent=1 // pred_check
      _
    $region19: #{tpu_custom_call.1} parent=1 // pred_check_branch
      %42 = sbr.rel (0) target = $region21
    $region20: #{tpu_custom_call.1} parent=1 // pred_region
      %43 = dma.done [#allocation7], 2048
    $region21: #{tpu_custom_call.1} parent=1 // pred_fallthru
      _
    %v44 = vld [vmem:[#allocation3] sm:$0xff]
    %v45 = vld [vmem:[#allocation3 + $0x8] sm:$0xff]
    %s46 = sld [smem:[#allocation2]]
    %v47 = vmul.f32 %v44, %v44
    %v48 = vmul.f32 %v45, %v45
    %vm49 = vcmask 523264
    %v50 = vsel %vm49, %v47, 0.0
    %51 = vadd.xlane.f32.xlu0 %v50
    %v52 = vpop.xlane.xlu0 %51
    %v53 = vsel %vm49, %v48, 0.0
    %54 = vadd.xlane.f32.xlu0 %v53
    %v55 = vpop.xlane.xlu0 %54
    %v56 = vmax.f32 %v52, 1e-24
    %v57 = vmax.f32 %v55, 1e-24
    %v58 = vrsqrt.pop %v56
    %v59 = vrsqrt.pop %v57
    %v60 = vstv %s46
    %v61 = vmul.f32 %v58, %v60
    %v62 = vmul.f32 %v59, %v60
    %v63 = vmul.f32 %v44, %v61
    %v64 = vmul.f32 %v45, %v62
    %v65 = vld [vmem:[#allocation6] sm:$0xff]
    %v66 = vld [vmem:[#allocation6 + $0x8] sm:$0xff]
    %v67 = vld [vmem:[#allocation6 + $0x10] sm:$0xff]
    %v68 = vld [vmem:[#allocation6 + $0x18] sm:$0xff]
    %v69 = vld [vmem:[#allocation6 + $0x20] sm:$0xff]
    %v70 = vld [vmem:[#allocation6 + $0x28] sm:$0xff]
    %v71 = vld [vmem:[#allocation6 + $0x30] sm:$0xff]
    %v72 = vld [vmem:[#allocation6 + $0x38] sm:$0xff]
    %v73 = vld [vmem:[#allocation6 + $0x40] sm:$0xff]
    %v74 = vld [vmem:[#allocation6 + $0x48] sm:$0xff]
    %v75 = vld [vmem:[#allocation6 + $0x50] sm:$0xff]
    %v76 = vld [vmem:[#allocation6 + $0x58] sm:$0xff]
    %v77 = vld [vmem:[#allocation6 + $0x60] sm:$0xff]
    %v78 = vld [vmem:[#allocation6 + $0x68] sm:$0xff]
    %v79 = vld [vmem:[#allocation6 + $0x70] sm:$0xff]
    %v80 = vld [vmem:[#allocation6 + $0x78] sm:$0xff]
    %v82 = vsel %vm49, %v63, 0
    %v85 = vsel %vm49, %v64, 0
    %87 = vmatprep.subr.mxu0 %v66
    %88 = vmatpush1.msra.mxu0 %v65
    %89 = vmatprep.subr.mxu0 %v68
    %90 = vmatpush1.msra.mxu0 %v67
    %91 = vmatprep.subr.mxu0 %v70
    %92 = vmatpush1.msra.mxu0 %v69
    %93 = vmatprep.subr.mxu0 %v72
    %94 = vmatpush1.msra.mxu0 %v71
    %95 = vmatprep.subr.mxu0 %v74
    %96 = vmatpush1.msra.mxu0 %v73
    %97 = vmatprep.subr.mxu0 %v76
    %98 = vmatpush1.msra.mxu0 %v75
    %99 = vmatprep.subr.mxu0 %v78
    %100 = vmatpush1.msra.mxu0 %v77
    %101 = vmatprep.subr.mxu0 %v80
    %102 = vmatpush1.msra.mxu0 %v79
    %103 = vmatprep.subr.mxu0 0.0
    %104 = vmatpush1.msra.mxu0 0.0
    %105 = vmatprep.subr.mxu0 0.0
    %106 = vmatpush1.msra.mxu0 0.0
    %107 = vmatprep.subr.mxu0 0.0
    %108 = vmatpush1.msra.mxu0 0.0
    %109 = vmatprep.subr.mxu0 0.0
    %110 = vmatpush1.msra.mxu0 0.0
    %111 = vmatprep.subr.mxu0 0.0
    %112 = vmatpush1.msra.mxu0 0.0
    %113 = vmatprep.subr.mxu0 0.0
    %114 = vmatpush1.msra.mxu0 0.0
    %115 = vmatprep.subr.mxu0 0.0
    %116 = vmatpush1.msra.mxu0 0.0
    %117 = vmatprep.subr.mxu0 0.0
    %118 = vmatpush1.msra.mxu0 0.0
    %119 = vmatprep.subr.mxu0 0.0
    %120 = vmatpush1.msra.mxu0 0.0
    %121 = vmatprep.subr.mxu0 0.0
    %122 = vmatpush1.msra.mxu0 0.0
    %123 = vmatprep.subr.mxu0 0.0
    %124 = vmatpush1.msra.mxu0 0.0
    %125 = vmatprep.subr.mxu0 0.0
    %126 = vmatpush1.msra.mxu0 0.0
    %127 = vmatprep.subr.mxu0 0.0
    %128 = vmatpush1.msra.mxu0 0.0
    %129 = vmatprep.subr.mxu0 0.0
    %130 = vmatpush1.msra.mxu0 0.0
    %131 = vmatprep.subr.mxu0 0.0
    %132 = vmatpush1.msra.mxu0 0.0
    %133 = vmatprep.subr.mxu0 0.0
    %134 = vmatpush1.msra.mxu0 0.0
    %135 = vmatprep.subr.mxu0 0.0
    %136 = vmatpush1.msra.mxu0 0.0
    %137 = vmatprep.subr.mxu0 0.0
    %138 = vmatpush1.msra.mxu0 0.0
    %139 = vmatprep.subr.mxu0 0.0
    %140 = vmatpush1.msra.mxu0 0.0
    %141 = vmatprep.subr.mxu0 0.0
    %142 = vmatpush1.msra.mxu0 0.0
    %143 = vmatprep.subr.mxu0 0.0
    %144 = vmatpush1.msra.mxu0 0.0
    %145 = vmatprep.subr.mxu0 0.0
    %146 = vmatpush1.msra.mxu0 0.0
    %147 = vmatprep.subr.mxu0 0.0
    %148 = vmatpush1.msra.mxu0 0.0
    %149 = vmatprep.subr.mxu0 0.0
    %150 = vmatpush1.msra.mxu0 0.0
    %151 = vmatprep.mubr.f32.mxu0 0.0
    %152 = vmatmul.mubr.f32.gmra.mrb[0].mxu0 %v82
    %v153 = vpop.f32.mrb[0].mxu0
    %v154 = vadd.f32 0.0, %v153
    %v155 = vpop.f32.mrb[0].mxu0
    %v156 = vadd.f32 0.0, %v155
    %157 = vmatprep.mubr.f32.mxu0 0.0
    %158 = vmatmul.mubr.f32.gmra.mrb[0].mxu0 %v85
    %v159 = vpop.f32.mrb[0].mxu0
    %v160 = vadd.f32 0.0, %v159
    %v161 = vpop.f32.mrb[0].mxu0
    %v162 = vadd.f32 0.0, %v161
    %163 = vdwg.mxu0
    %164 = vst [vmem:[#allocation8] sm:$0xff] %v154
    %165 = vst [vmem:[#allocation8 + $0x8] sm:$0xff] %v156
    %166 = vst [vmem:[#allocation8 + $0x10] sm:$0xff] %v160
    %167 = vst [vmem:[#allocation8 + $0x18] sm:$0xff] %v162
    // Predicated region
    $region22: #{tpu_custom_call.1} parent=1 // pred_check
      _
    $region23: #{tpu_custom_call.1} parent=1 // pred_check_branch
      %169 = sbr.rel (0) target = $region25
    $region24: #{tpu_custom_call.1} parent=1 // pred_region
      %s171 = ssub.s32 512, 512
      %172 = vsyncadd [#allocation5], %s171
      %s173 = sshll.u32 [#allocation8], 4
      %s174 = int_to_ptr.vmem [resolvable:$true] %s173
      %179 = dma.vmem_to_hbm [thread:$0]  %s174, 512, %s3, [#allocation5], 256, 256, 16
    $region25: #{tpu_custom_call.1} parent=1 // pred_fallthru
      _
    // Predicated region
    $region26: #{tpu_custom_call.1} parent=1 // pred_check
      _
    $region27: #{tpu_custom_call.1} parent=1 // pred_check_branch
      %181 = sbr.rel (0) target = $region29
    $region28: #{tpu_custom_call.1} parent=1 // pred_region
      %182 = dma.done [#allocation5], 512
    $region29: #{tpu_custom_call.1} parent=1 // pred_fallthru
      _
    %183 = vsyncpa [#allocation4], 1
    %184 = vsyncpa [#allocation7], 1
    %185 = vsyncpa [#allocation5], 1

</llo_original>
